<compile_context>
chip_gen: v7x
topology: tpu7x:2x2x1
jax: 0.10.0
libtpu: 0.0.40
codegen_flags: <defaults>
</compile_context>

<pallas_src>
import functools

import jax
import jax.numpy as jnp
from jax import lax
from jax.experimental import pallas as pl
from jax.experimental.pallas import tpu as pltpu


def _ls_ce_kernel(x_ref, t_ref, out_ref, *, smoothing, tile, n_rows):
    confidence = 1.0 - smoothing

    xn = x_ref[...]                                   # (tile, C) native dtype
    num_classes = xn.shape[-1]

    # Row max in native dtype (bf16 runs packed on v6e/v7x VALU).
    m = jnp.max(xn, axis=-1, keepdims=True)           # (tile, 1)
    # Single f32 full-tile temporary; shifted so exp(.) <= 1 (no overflow).
    xf = (xn - m).astype(jnp.float32)                 # (tile, C) f32

    # Fused weighted reduce:
    #   w = smoothing/C + confidence * onehot(target), sum(w) == 1, so the row
    #   max cancels between logsumexp(x) and sum(w*x):
    #   loss = log(sum(exp(x-m))) - sum(w*(x-m))
    col = lax.broadcasted_iota(jnp.int32, xf.shape, 1)           # (tile, C)
    base = jnp.float32(smoothing / num_classes)
    w = jnp.where(col == t_ref[...], base + jnp.float32(confidence), base)

    lse = jnp.log(jnp.sum(jnp.exp(xf), axis=-1, keepdims=True))  # (tile, 1)
    wx = jnp.sum(w * xf, axis=-1, keepdims=True)                 # (tile, 1)
    loss = lse - wx                                              # (tile, 1) f32

    # Statically skipped when N is a multiple of the tile.  Select (not mul):
    # padded rows of the last block may hold garbage/NaN and must be discarded.
    if n_rows % tile != 0:
        i = pl.program_id(0)
        row = i * tile + lax.broadcasted_iota(jnp.int32, (tile, 1), 0)
        loss = jnp.where(row < n_rows, loss, 0.0)

    # Lane-dense (1, 1, 128) block write; only lane 0 is consumed outside.
    out_ref[...] = jnp.full(out_ref.shape, jnp.sum(loss), dtype=jnp.float32)


def label_smoothing_cross_entropy(x, target, smoothing=0.1, tile=None):
    """x: (N, C) float logits (f32 or bf16), target: (N,) int class ids.

    Returns scalar f32 loss = mean over rows of the label-smoothed NLL,
    matching timm-style LabelSmoothingCrossEntropy.forward.
    """
    assert smoothing < 1.0
    N, C = x.shape
    in_bytes = jnp.dtype(x.dtype).itemsize
    sublane = 16 if in_bytes == 2 else 8

    if tile is None:
        # ~4 MiB per x input block: big enough to sit on the HBM roofline on
        # all generations, small enough that 2x (double-buffer) input blocks +
        # the single f32 full-tile temporary fit v7x's 64 MiB VMEM.
        budget_bytes = 4 * 1024 * 1024
        t = max(sublane, budget_bytes // max(C * in_bytes, 1))
        t = max(sublane, (t // sublane) * sublane)
        n_ceil = -(-N // sublane) * sublane
        tile = min(t, n_ceil)
        # Guarantee >= 2 grid steps (when N allows) so both v7x TensorCores
        # get work under dimension_semantics=("parallel",).
        if -(-N // tile) < 2 and N > sublane:
            half = -(-N // 2)
            tile = max(sublane, -(-half // sublane) * sublane)
    assert tile % sublane == 0, "tile must respect sublane packing for dtype"

    num_tiles = -(-N // tile)
    t2d = target.astype(jnp.int32).reshape(N, 1)

    kernel = functools.partial(
        _ls_ce_kernel, smoothing=float(smoothing), tile=int(tile), n_rows=int(N)
    )

    # VMEM estimate: double-buffered input blocks + bounded f32 temporaries +
    # slack; capped well under v7x's 64 MiB physical VMEM.
    vmem_est = 2 * tile * C * in_bytes + 3 * tile * C * 4 + 8 * tile * 4 + (2 << 20)
    vmem_limit = int(min(40 << 20, max(16 << 20, vmem_est)))

    cost = pl.CostEstimate(
        flops=7 * N * C,
        transcendentals=N * C + N,                  # exp per element, log per row
        bytes_accessed=N * C * in_bytes + N * 4 + num_tiles * 128 * 4,
    )

    partials = pl.pallas_call(
        kernel,
        out_shape=jax.ShapeDtypeStruct((num_tiles, 1, 128), jnp.float32),
        grid_spec=pltpu.PrefetchScalarGridSpec(
            num_scalar_prefetch=0,
            grid=(num_tiles,),
            in_specs=[
                pl.BlockSpec((tile, C), lambda i: (i, 0)),
                pl.BlockSpec((tile, 1), lambda i: (i, 0)),
            ],
            out_specs=pl.BlockSpec((1, 1, 128), lambda i: (i, 0, 0)),
        ),
        compiler_params=pltpu.CompilerParams(
            dimension_semantics=("parallel",),
            vmem_limit_bytes=vmem_limit,
        ),
        cost_estimate=cost,
    )(x, t2d)

    # Final (tiny) reduction of per-tile partial sums in plain JAX.
    return jnp.sum(partials[:, 0, 0]) / jnp.float32(N)


def _ref_loss(x, target, smoothing=0.1):
    confidence = 1.0 - smoothing
    logprobs = jax.nn.log_softmax(x.astype(jnp.float32), axis=-1)
    nll = -jnp.take_along_axis(logprobs, target[:, None], axis=-1)[:, 0]
    smooth = -jnp.mean(logprobs, axis=-1)
    return jnp.mean(confidence * nll + smoothing * smooth)


if __name__ == "__main__":
    key = jax.random.PRNGKey(0)
    kx, kt = jax.random.split(key)

    # f32 case with a ragged row count (exercises last-tile masking + >=2 tiles).
    N, C = 10, 32
    x = jax.random.normal(kx, (N, C), dtype=jnp.float32)
    target = jax.random.randint(kt, (N,), 0, C, dtype=jnp.int32)
    loss = jax.block_until_ready(label_smoothing_cross_entropy(x, target, 0.1))
    ref = _ref_loss(x, target, 0.1)
    assert jnp.allclose(loss, ref, atol=1e-5, rtol=1e-5), (loss, ref)

    # bf16 case (halves HBM traffic at production shapes; tile is a multiple of 16).
    kx2, kt2 = jax.random.split(jax.random.PRNGKey(0))
    N2, C2 = 24, 160
    x2 = jax.random.normal(kx2, (N2, C2), dtype=jnp.float32).astype(jnp.bfloat16)
    t2 = jax.random.randint(kt2, (N2,), 0, C2, dtype=jnp.int32)
    loss2 = jax.block_until_ready(label_smoothing_cross_entropy(x2, t2, 0.1))
    ref2 = _ref_loss(x2, t2, 0.1)
    assert jnp.allclose(loss2, ref2, atol=1e-4, rtol=1e-4), (loss2, ref2)

    print("KERNEL_OK")
</pallas_src>

<mosaic_0001>
module attributes {stable_mosaic.version = 11 : i64} {
  func.func @_ls_ce_kernel(%arg0: i32, %arg1: memref<8x32xf32, #tpu.memory_space<vmem>>, %arg2: memref<8x1xi32, #tpu.memory_space<vmem>>, %arg3: memref<1x1x128xf32, #tpu.memory_space<vmem>>) attributes {dimension_semantics = [#tpu.dimension_semantics<parallel>], iteration_bounds = array<i64: 2>, scalar_prefetch = 0 : i64, scratch_operands = 0 : i64, tpu.core_type = #tpu.core_type<tc>, window_params = [{transform_indices = @transform_0, window_bounds = array<i64: 8, 32>}, {transform_indices = @transform_1, window_bounds = array<i64: 8, 1>}, {transform_indices = @transform_2, window_bounds = array<i64: 1, 1, 128>}]} {
    %c0 = arith.constant 0 : index
    %c0_0 = arith.constant 0 : index
    %0 = vector.load %arg1[%c0, %c0_0] : memref<8x32xf32, #tpu.memory_space<vmem>>, vector<8x32xf32>
    %cst = arith.constant dense<0xFF800000> : vector<8xf32>
    %1 = vector.multi_reduction <maximumf>, %0, %cst [1] : vector<8x32xf32> to vector<8xf32>
    %2 = vector.shape_cast %1 : vector<8xf32> to vector<8x1xf32>
    %3 = vector.broadcast %2 : vector<8x1xf32> to vector<8x32xf32>
    %4 = arith.subf %0, %3 : vector<8x32xf32>
    %5 = tpu.iota {dimensions = array<i32: 1>} : vector<8x32xi32>
    %c0_1 = arith.constant 0 : index
    %c0_2 = arith.constant 0 : index
    %6 = vector.load %arg2[%c0_1, %c0_2] : memref<8x1xi32, #tpu.memory_space<vmem>>, vector<8x1xi32>
    %7 = vector.broadcast %6 : vector<8x1xi32> to vector<8x32xi32>
    %8 = arith.cmpi eq, %5, %7 : vector<8x32xi32>
    %cst_3 = arith.constant 3.125000e-03 : f32
    %cst_4 = arith.constant 0.899999976 : f32
    %9 = arith.addf %cst_3, %cst_4 : f32
    %cst_5 = arith.constant 3.125000e-03 : f32
    %10 = vector.broadcast %9 : f32 to vector<8x32xf32>
    %11 = vector.broadcast %cst_5 : f32 to vector<8x32xf32>
    %12 = arith.select %8, %10, %11 : vector<8x32xi1>, vector<8x32xf32>
    %13 = math.exp %4 : vector<8x32xf32>
    %cst_6 = arith.constant dense<0.000000e+00> : vector<8xf32>
    %14 = vector.multi_reduction <add>, %13, %cst_6 [1] : vector<8x32xf32> to vector<8xf32>
    %15 = vector.shape_cast %14 : vector<8xf32> to vector<8x1xf32>
    %16 = math.log %15 : vector<8x1xf32>
    %17 = arith.mulf %12, %4 : vector<8x32xf32>
    %cst_7 = arith.constant dense<0.000000e+00> : vector<8xf32>
    %18 = vector.multi_reduction <add>, %17, %cst_7 [1] : vector<8x32xf32> to vector<8xf32>
    %19 = vector.shape_cast %18 : vector<8xf32> to vector<8x1xf32>
    %20 = arith.subf %16, %19 : vector<8x1xf32>
    %c8_i32 = arith.constant 8 : i32
    %21 = arith.muli %arg0, %c8_i32 : i32
    %22 = tpu.iota {dimensions = array<i32: 0>} : vector<8x1xi32>
    %23 = vector.broadcast %21 : i32 to vector<8x1xi32>
    %24 = arith.addi %23, %22 : vector<8x1xi32>
    %c10_i32 = arith.constant 10 : i32
    %25 = vector.broadcast %c10_i32 : i32 to vector<8x1xi32>
    %26 = arith.cmpi slt, %24, %25 : vector<8x1xi32>
    %cst_8 = arith.constant 0.000000e+00 : f32
    %27 = vector.broadcast %cst_8 : f32 to vector<8x1xf32>
    %28 = arith.select %26, %20, %27 : vector<8x1xi1>, vector<8x1xf32>
    %29 = vector.shape_cast %28 : vector<8x1xf32> to vector<1x8x1xf32>
    %cst_9 = arith.constant dense<0.000000e+00> : vector<1xf32>
    %30 = vector.multi_reduction <add>, %29, %cst_9 [1, 2] : vector<1x8x1xf32> to vector<1xf32>
    %31 = vector.shape_cast %30 : vector<1xf32> to vector<1x1x1xf32>
    %32 = vector.extract %31[0, 0, 0] : f32 from vector<1x1x1xf32>
    %33 = vector.broadcast %32 : f32 to vector<1x1x128xf32>
    %c0_10 = arith.constant 0 : index
    %c0_11 = arith.constant 0 : index
    %c0_12 = arith.constant 0 : index
    %34 = vector.load %arg3[%c0_10, %c0_11, %c0_12] : memref<1x1x128xf32, #tpu.memory_space<vmem>>, vector<1x1x128xf32>
    tpu.vector_store %arg3[%c0_10, %c0_11, %c0_12], %33 {strides = array<i32>} : memref<1x1x128xf32, #tpu.memory_space<vmem>>, vector<1x1x128xf32>,
    return
  }
  func.func @transform_0(%arg0: i32) -> (i32, i32) {
    %c0_i32 = arith.constant 0 : i32
    %c0_i32_0 = arith.constant 0 : i32
    return %arg0, %c0_i32 : i32, i32
  }
  func.func @transform_1(%arg0: i32) -> (i32, i32) {
    %c0_i32 = arith.constant 0 : i32
    %c0_i32_0 = arith.constant 0 : i32
    return %arg0, %c0_i32 : i32, i32
  }
  func.func @transform_2(%arg0: i32) -> (i32, i32, i32) {
    %c0_i32 = arith.constant 0 : i32
    %c0_i32_0 = arith.constant 0 : i32
    %c0_i32_1 = arith.constant 0 : i32
    return %arg0, %c0_i32, %c0_i32_0 : i32, i32, i32
  }
}

</mosaic_0001>

<llo_original>
// kernel: tpu_custom_call.1
$region0: #{tpu_custom_call.1}
  #allocation0 [shape = 'u32[]', space=smem, size = 0x4, offset = 0x4, fixed_abs, tag = 'smem constant byte address 0x4 - core index']
  #allocation1 [shape = 'u32[144,128]{1,0:T(1,128)}', space=vmem, size = 0x12000, scoped, tag = 'internal scratch']
  %s0 = inlined_call_operand.vmem [shape: f32[10,32], index: 0, kind: input, shape index: {}]
  %s1 = inlined_call_operand.vmem [shape: s32[10,1], index: 1, kind: input, shape index: {}]
  %s2 = inlined_call_operand.hbm [shape: f32[2,1,128], index: 2, kind: output, shape index: {}]
  %s3 = sld [smem:[#allocation0]]
  $region41: #{tpu_custom_call.1} parent=0
    _
  %s5 = ssub.s32 1, %s3
  %s6 = scalar_select 0, %s5, %s3
  $region1: #{tpu_custom_call.1} parent=0
    #allocation2 [shape = 'u8[1024]{0}', space=vmem, size = 0x400, scoped, tag = 'output window, operand 0']
    #allocation3 [shape = 's32[2]{0}', space=sflag, size = 0x8, scoped, tag = 'scoped memory for tpu_custom_call.1']
    %7 = vsyncpa [#allocation3], 0
    %s8 = scalar_lea.sflag [#allocation3], 1
    %9 = vsyncpa %s8, 0
    loop: start=0, step=1, limit=4
    $region2: #{tpu_custom_call.1} parent=1 // loop_pre_header
      _
    $region3: #{tpu_custom_call.1} parent=1 // loop_header
      %s11 = sphi 0, %s15
      %p12 = scmp.ge.s32.totalorder %s11, 4
      %s21 = sphi 0, %s23
      %s24 = sphi 0, %s21
      %s25 = sphi 0, %s24
      %s41 = sphi 0, %s25
      %s47 = sphi 0, %s49
      %s50 = sphi 0, %s47
      %s51 = sphi 0, %s50
      %s67 = sphi 0, %s51
      %s73 = sphi 0, %s75
      %s76 = sphi 0, %s73
      %s77 = sphi 0, %s76
      %s93 = sphi 0, %s77
    $region4: #{tpu_custom_call.1} parent=1 // loop_header_branch
      %14 = sbr.rel (%p12) target = $region8
    $region5: #{tpu_custom_call.1} parent=1 // loop_body
      %s16 = ssub.s32 %s11, 1
      %s17 = ssub.s32 %s11, 2
      %s18 = sadd.s32 %s11, 1
      %s19 = ssub.s32 %s11, %s18
      %p20 = scmp.eq.s32.totalorder %s19, 0
      %s22 = sadd.s32 %s21, 1
      %s23 = scalar_select %p20, %s21, %s22
      %p26 = pneg %p20
      %p27 = scmp.eq.s32.totalorder %s11, 1
      %p28 = por %p26, %p27
      %p29 = scmp.ne.s32.totalorder %s21, %s24
      %p30 = scmp.eq.s32.totalorder %s11, 0
      %p31 = por %p29, %p30
      %p32 = scmp.ne.s32.totalorder %s21, %s24
      %p33 = scmp.eq.s32.totalorder %s16, 1
      %p34 = por %p32, %p33
      %p35 = scmp.ne.s32.totalorder %s24, %s25
      %p36 = scmp.eq.s32.totalorder %s16, 0
      %p37 = por %p35, %p36
      %p38 = scmp.ne.s32.totalorder %s24, %s25
      %p39 = scmp.eq.s32.totalorder %s17, 1
      %p40 = por %p38, %p39
      %p42 = scmp.ne.s32.totalorder %s25, %s41
      %p43 = scmp.eq.s32.totalorder %s17, 0
      %p44 = por %p42, %p43
      %s45 = ssub.s32 %s11, %s18
      %p46 = scmp.eq.s32.totalorder %s45, 0
      %s48 = sadd.s32 %s47, 1
      %s49 = scalar_select %p46, %s47, %s48
      %p52 = pneg %p46
      %p53 = scmp.eq.s32.totalorder %s11, 1
      %p54 = por %p52, %p53
      %p55 = scmp.ne.s32.totalorder %s47, %s50
      %p56 = scmp.eq.s32.totalorder %s11, 0
      %p57 = por %p55, %p56
      %p58 = scmp.ne.s32.totalorder %s47, %s50
      %p59 = scmp.eq.s32.totalorder %s16, 1
      %p60 = por %p58, %p59
      %p61 = scmp.ne.s32.totalorder %s50, %s51
      %p62 = scmp.eq.s32.totalorder %s16, 0
      %p63 = por %p61, %p62
      %p64 = scmp.ne.s32.totalorder %s50, %s51
      %p65 = scmp.eq.s32.totalorder %s17, 1
      %p66 = por %p64, %p65
      %p68 = scmp.ne.s32.totalorder %s51, %s67
      %p69 = scmp.eq.s32.totalorder %s17, 0
      %p70 = por %p68, %p69
      %s71 = ssub.s32 %s11, %s18
      %p72 = scmp.eq.s32.totalorder %s71, 0
      %s74 = sadd.s32 %s73, 1
      %s75 = scalar_select %p72, %s73, %s74
      %p78 = pneg %p72
      %p79 = scmp.eq.s32.totalorder %s11, 1
      %p80 = por %p78, %p79
      %p81 = scmp.ne.s32.totalorder %s73, %s76
      %p82 = scmp.eq.s32.totalorder %s11, 0
      %p83 = por %p81, %p82
      %p84 = scmp.ne.s32.totalorder %s73, %s76
      %p85 = scmp.eq.s32.totalorder %s16, 1
      %p86 = por %p84, %p85
      %p87 = scmp.ne.s32.totalorder %s76, %s77
      %p88 = scmp.eq.s32.totalorder %s16, 0
      %p89 = por %p87, %p88
      %p90 = scmp.ne.s32.totalorder %s76, %s77
      %p91 = scmp.eq.s32.totalorder %s17, 1
      %p92 = por %p90, %p91
      %p94 = scmp.ne.s32.totalorder %s77, %s93
      %p95 = scmp.eq.s32.totalorder %s17, 0
      %p96 = por %p94, %p95
      %p97 = scmp.le.s32.totalorder 1, %s11
      %p98 = scmp.lt.s32.totalorder %s11, 3
      %p99 = pnand %p97, %p98
      %p100 = pneg %p99
      // Predicated region
      $region9: #{tpu_custom_call.1} parent=5 // pred_check
        _
      $region10: #{tpu_custom_call.1} parent=5 // pred_check_branch
        %102 = sbr.rel (%p99) target = $region12
      $region11: #{tpu_custom_call.1} parent=5 // pred_region
        %s103 = ssub.s32 %s11, 1
      $region12: #{tpu_custom_call.1} parent=5 // pred_fallthru
        _
      %p104 = scmp.lt.s32.totalorder %s11, 2
      // Predicated region
      $region13: #{tpu_custom_call.1} parent=5 // pred_check
        %p105 = pneg %p104
      $region14: #{tpu_custom_call.1} parent=5 // pred_check_branch
        %107 = sbr.rel (%p105) target = $region16
      $region15: #{tpu_custom_call.1} parent=5 // pred_region
        // Predicated region
        $region17: #{tpu_custom_call.1} parent=15 // pred_check
          %p108 = pneg %p31
        $region18: #{tpu_custom_call.1} parent=15 // pred_check_branch
          %110 = sbr.rel (%p108) target = $region20
        $region19: #{tpu_custom_call.1} parent=15 // pred_region
          %p111 = scmp.lt.s32.totalorder %s11, 1
          %s112 = scalar_select %p111, %s11, 1
          %s113 = smul.addr %s112, 8
          %s114 = scalar_lea.vmem %s0, %s113
        $region20: #{tpu_custom_call.1} parent=15 // pred_fallthru
          _
        // Predicated region
        $region21: #{tpu_custom_call.1} parent=15 // pred_check
          %p115 = pneg %p57
        $region22: #{tpu_custom_call.1} parent=15 // pred_check_branch
          %117 = sbr.rel (%p115) target = $region24
        $region23: #{tpu_custom_call.1} parent=15 // pred_region
          %p118 = scmp.lt.s32.totalorder %s11, 1
          %s119 = scalar_select %p118, %s11, 1
          %s120 = smul.addr %s119, 8
          %s121 = scalar_lea.vmem %s1, %s120
        $region24: #{tpu_custom_call.1} parent=15 // pred_fallthru
          _
      $region16: #{tpu_custom_call.1} parent=5 // pred_fallthru
        _
      %p122 = scmp.le.s32.totalorder 1, %s11
      %p123 = scmp.lt.s32.totalorder %s11, 3
      %p124 = pnand %p122, %p123
      %p125 = pneg %p124
      // Predicated region
      $region25: #{tpu_custom_call.1} parent=5 // pred_check
        _
      $region26: #{tpu_custom_call.1} parent=5 // pred_check_branch
        %127 = sbr.rel (%p124) target = $region28
      $region27: #{tpu_custom_call.1} parent=5 // pred_region
        %s128 = ssub.s32 %s11, 1
        %p129 = scmp.lt.s32.totalorder %s16, 1
        %s130 = scalar_select %p129, %s16, 1
        %s131 = smul.addr %s130, 8
        %s132 = scalar_lea.vmem %s0, %s131
        %p133 = pneg %p37
        %p134 = pneg %p34
        %p135 = scmp.lt.s32.totalorder %s16, 1
        %s136 = scalar_select %p135, %s16, 1
        %s137 = smul.addr %s136, 8
        %s138 = scalar_lea.vmem %s1, %s137
        %p139 = pneg %p63
        %p140 = pneg %p60
        %p141 = pneg %p89
        %p142 = pneg %p86
        %s143 = sand.u32 %s76, 1
        %s144 = scalar_lea.sflag [#allocation3], %s143
        %s145 = sand.u32 %s76, 1
        %s146 = scalar_lea.vmem [#allocation2], %s145
        %p147 = scmp.lt.s32.totalorder %s16, 1
        %s148 = scalar_select %p147, %s16, 1
        %s149 = smul.addr %s148, 8
        %s150 = scalar_lea.vmem %s0, %s149
        %p151 = scmp.lt.s32.totalorder %s16, 1
        %s152 = scalar_select %p151, %s16, 1
        %s153 = smul.addr %s152, 8
        %s154 = scalar_lea.vmem %s1, %s153
        %v155 = vld [vmem:[%s150] sm:$0xff]
        %vm156 = vcmask 261120
        %v157 = vsel %vm156, %v155, -inf
        %158 = vmax.xlane.f32.xlu0 %v157
        %v159 = vpop.xlane.xlu0 %158
        %v160 = vsub.f32 %v155, %v159
        %v161 = vlaneseq
        %v162 = vand.u32 %v161, 127
        %v163 = vld [vmem:[%s154] sm:$0xff]
        %164 = vset.pattern.permute.xlu0 0
        %165 = vperm.xlu0 %164, %v163
        %v166 = vpop.permute.xlu0 %165
        %vm167 = vcmp.eq.s32.totalorder %v162, %v166
        %v168 = vsel %vm167, 0.903125, 0.003125
        %v169 = vmul.f32 %v160, 1.442695
        %v170 = vpow.pop %v169
        %v171 = vsel %vm156, %v170, 0.0
        %172 = vadd.xlane.f32.xlu0 %v171
        %v173 = vpop.xlane.xlu0 %172
        %v174 = vlog2.pop %v173
        %v175 = vmul.f32 %v174, 0.6931472
        %v176 = vmul.f32 %v168, %v160
        %v177 = vsel %vm156, %v176, 0.0
        %178 = vadd.xlane.f32.xlu0 %v177
        %v179 = vpop.xlane.xlu0 %178
        %v180 = vsub.f32 %v175, %v179
        %s181 = smul.u32 %s16, 8
        %v182 = vlaneseq
        %v183 = vshrl.u32 %v182, 7
        %v184 = vstv %s181
        %v185 = vadd.s32 %v184, %v183
        %vm186 = vcmp.lt.s32.totalorder %v185, 10
        %v187 = vsel %vm186, %v180, 0.0
        %vm188 = vcmask 7168
        %v189 = vsel %vm188, %v187, 0.0
        %190 = vadd.xlane.f32.xlu0 %v189
        %v191 = vpop.xlane.xlu0 %190
        %v192 = vrot.slane %v191, 4
        %v193 = vadd.f32 %v191, %v192
        %v194 = vrot.slane %v193, 2
        %v195 = vadd.f32 %v193, %v194
        %v196 = vrot.slane %v195, 1
        %v197 = vadd.f32 %v195, %v196
        %s198 = vtos %v197
        %v199 = vstv %s198
        %200 = vst [vmem:[%s146] sm:$0x1] %v199
        %s201 = sand.u32 %s76, 1
        %s202 = scalar_lea.sflag [#allocation3], %s201
        %s203 = sand.u32 %s76, 1
        %s204 = scalar_lea.vmem [#allocation2], %s203
        // Predicated region
        $region29: #{tpu_custom_call.1} parent=27 // pred_check
          %p205 = pneg %p86
        $region30: #{tpu_custom_call.1} parent=27 // pred_check_branch
          %207 = sbr.rel (%p205) target = $region32
        $region31: #{tpu_custom_call.1} parent=27 // pred_region
          %s209 = ssub.s32 16, 16
          %210 = vsyncadd %s202, %s209
          %s211 = smul.addr %s16, 16
          %s212 = scalar_lea.hbm %s2, %s211
          %s214 = sshll.u32 %s204, 4
          %s215 = int_to_ptr.vmem [resolvable:$true] %s214
          %217 = dma.vmem_to_hbm [thread:$0]  %s215, 16, %s212, %s202
        $region32: #{tpu_custom_call.1} parent=27 // pred_fallthru
          _
      $region28: #{tpu_custom_call.1} parent=5 // pred_fallthru
        _
      %p218 = scmp.le.s32.totalorder 2, %s11
      // Predicated region
      $region33: #{tpu_custom_call.1} parent=5 // pred_check
        %p219 = pneg %p218
      $region34: #{tpu_custom_call.1} parent=5 // pred_check_branch
        %221 = sbr.rel (%p219) target = $region36
      $region35: #{tpu_custom_call.1} parent=5 // pred_region
        %s222 = ssub.s32 %s11, 2
        // Predicated region
        $region37: #{tpu_custom_call.1} parent=35 // pred_check
          %p223 = pneg %p92
        $region38: #{tpu_custom_call.1} parent=35 // pred_check_branch
          %225 = sbr.rel (%p223) target = $region40
        $region39: #{tpu_custom_call.1} parent=35 // pred_region
          %s226 = sand.u32 %s77, 1
          %s227 = scalar_lea.sflag [#allocation3], %s226
          %s228 = sand.u32 %s77, 1
          %s229 = scalar_lea.vmem [#allocation2], %s228
          %230 = dma.done %s227, 16
        $region40: #{tpu_custom_call.1} parent=35 // pred_fallthru
          _
      $region36: #{tpu_custom_call.1} parent=5 // pred_fallthru
        _
    $region6: #{tpu_custom_call.1} parent=1 // loop_footer
      %s15 = sadd.s32 1, %s11
    $region7: #{tpu_custom_call.1} parent=1 // loop_footer_branch
      %10 = sbr.rel target = $region3
    $region8: #{tpu_custom_call.1} parent=1 // loop_exit
      _
    %231 = vsyncpa [#allocation3], 1
    %s232 = scalar_lea.sflag [#allocation3], 1
    %233 = vsyncpa %s232, 1

</llo_original>
